<compile_context>
chip_gen: v6e
topology: v6e:2x2x1
jax: 0.10.0
libtpu: 0.0.40
codegen_flags: <defaults>
</compile_context>

<pallas_src>
import jax
import jax.numpy as jnp
from jax.experimental import pallas as pl
from jax.experimental.pallas import tpu as pltpu


_VMEM_BUDGET = 24 * 1024 * 1024   # target working set (fits v7x 32 MiB scoped VMEM)
_VMEM_LIMIT = 32 * 1024 * 1024    # explicit scoped-VMEM request (safe on v5e/v6e/v7x)


def alpha_net_kernel(x_ref, w1_ref, b1_ref, w2_ref, b2_ref, o_ref):
    # x: (TB, H)  w1: (H, H2)  b1: (1, H2)  w2: (1, H2)  b2: (1, 1)
    # o: (1, 1, TB)  -- lane-dense output row.
    h = jnp.maximum(x_ref[...], 0)                                     # ReLU (VPU)
    h1 = jnp.dot(h, w1_ref[...], preferred_element_type=jnp.float32)   # Linear 1 (MXU)
    h1 = jnp.maximum(h1 + b1_ref[...].astype(jnp.float32), 0.0)        # ReLU
    # Dropout(0.1): identity in eval mode.
    # Linear 2 (out_features = 1): VPU multiply + lane reduction; avoids an
    # N=1 MXU matmul that would use a single output column.
    out = jnp.sum(h1 * w2_ref[...].astype(jnp.float32),
                  axis=-1, keepdims=True)                              # (TB, 1)
    out = out + b2_ref[...].astype(jnp.float32)                        # (1,1) bcast
    out = out.T                                                        # (1, TB) XLU relayout
    o_ref[...] = out[None].astype(o_ref.dtype)                         # (1, 1, TB)


def _pick_batch_tile(B, H, itemsize, block_b):
    """Byte-based batch-tile sizing with sublane/lane alignment."""
    pack = {4: 8, 2: 16, 1: 32}.get(itemsize, 8)   # sublane pack factor for dtype
    if block_b is not None:
        tb = int(block_b)
    else:
        # ~4 MiB per streamed x buffer: 2 x-buffers + f32 intermediates + output
        # stay inside the 24 MiB working-set budget for any H.
        per_buf = max(1 << 20, _VMEM_BUDGET // 6)
        tb = per_buf // max(1, H * itemsize)
    # Keep >= 2 grid steps when the batch allows it (v7x megacore sharding).
    if B > 2 * pack:
        tb = min(tb, -(-B // 2))
    tb = max(pack, (tb // pack) * pack)
    if tb >= 128:
        tb = (tb // 128) * 128            # lane-dense, unmasked output stores
    if tb >= B:
        tb = B                            # full-array block is always legal
    return tb


def alpha_net_forward(x, w1, b1, w2, b2, *, block_b=None, compute_dtype=None,
                      training=False):
    """Forward pass of Alpha_net. Production callers should pass
    compute_dtype=jnp.bfloat16 (this kernel is HBM-bound on the x stream)."""
    if training:
        # TODO(synk): training-mode Dropout(0.1) needs pltpu.prng_seed /
        # pltpu.prng_random_bits masking; this kernel implements eval mode only.
        raise NotImplementedError("Alpha_net Pallas kernel is inference-only.")

    B, H = x.shape
    H2 = w1.shape[1]
    assert w1.shape == (H, H2) and b1.shape == (1, H2)
    assert w2.shape == (1, H2) and b2.shape == (1, 1)

    if compute_dtype is None:
        compute_dtype = x.dtype
    x = x.astype(compute_dtype)
    w1, b1, w2, b2 = (p.astype(compute_dtype) for p in (w1, b1, w2, b2))

    itemsize = jnp.dtype(compute_dtype).itemsize
    tb = _pick_batch_tile(B, H, itemsize, block_b)
    grid_n = pl.cdiv(B, tb)

    cost = pl.CostEstimate(
        flops=2 * B * H * H2 + 4 * B * H2 + 2 * B,
        transcendentals=0,
        bytes_accessed=(B * H * itemsize                       # x stream (dominant)
                        + (H * H2 + 2 * H2 + 1) * itemsize     # resident params
                        + grid_n * tb * itemsize),             # lane-dense output slab
    )

    out = pl.pallas_call(
        alpha_net_kernel,
        out_shape=jax.ShapeDtypeStruct((grid_n, 1, tb), compute_dtype),
        grid=(grid_n,),
        in_specs=[
            pl.BlockSpec((tb, H), lambda i: (i, 0)),   # x: streamed per batch tile
            pl.BlockSpec((H, H2), lambda i: (0, 0)),   # w1: VMEM-resident
            pl.BlockSpec((1, H2), lambda i: (0, 0)),   # b1: VMEM-resident
            pl.BlockSpec((1, H2), lambda i: (0, 0)),   # w2: VMEM-resident
            pl.BlockSpec((1, 1), lambda i: (0, 0)),    # b2: VMEM-resident
        ],
        out_specs=pl.BlockSpec((1, 1, tb), lambda i: (i, 0, 0)),  # lane-dense rows
        compiler_params=pltpu.CompilerParams(
            dimension_semantics=("parallel",),          # shard batch tiles across TCs
            vmem_limit_bytes=_VMEM_LIMIT,
        ),
        cost_estimate=cost,
    )(x, w1, b1, w2, b2)

    # Flatten the (grid_n, 1, tb) slab, drop padded garbage rows, restore (B, 1).
    return out.reshape(-1)[:B].reshape(B, 1)


def init_params(key, hidden_dim, dtype=jnp.float32):
    """Deterministic init mimicking nn.Linear's uniform(-1/sqrt(fan_in), ...)."""
    h2 = hidden_dim // 2
    k1, k2, k3, k4 = jax.random.split(key, 4)
    bound1 = 1.0 / jnp.sqrt(hidden_dim)
    bound2 = 1.0 / jnp.sqrt(h2)
    w1 = jax.random.uniform(k1, (hidden_dim, h2), jnp.float32, -bound1, bound1)
    b1 = jax.random.uniform(k2, (1, h2), jnp.float32, -bound1, bound1)
    w2 = jax.random.uniform(k3, (1, h2), jnp.float32, -bound2, bound2)   # row vector
    b2 = jax.random.uniform(k4, (1, 1), jnp.float32, -bound2, bound2)
    return tuple(p.astype(dtype) for p in (w1, b1, w2, b2))


def _reference(x, w1, b1, w2, b2):
    h = jnp.maximum(x.astype(jnp.float32), 0.0)
    h1 = jnp.maximum(h @ w1.astype(jnp.float32) + b1.astype(jnp.float32), 0.0)
    return h1 @ w2.astype(jnp.float32).T + b2.astype(jnp.float32)


if __name__ == "__main__":
    hidden_dim = 32

    key = jax.random.PRNGKey(0)
    kx, kp, kx2 = jax.random.split(key, 3)
    w1, b1, w2, b2 = init_params(kp, hidden_dim)

    # 1) Small single-tile case (batch=8), exact f32 semantics.
    x = jax.random.normal(kx, (8, hidden_dim), jnp.float32)
    out = jax.block_until_ready(alpha_net_forward(x, w1, b1, w2, b2))
    ref = _reference(x, w1, b1, w2, b2)
    assert out.shape == (8, 1), out.shape
    assert jnp.allclose(out, ref, atol=1e-5, rtol=1e-5), "f32 mismatch vs reference"

    # 2) Multi-tile case, auto tile sizing, partial final block (B=300).
    xb = jax.random.normal(kx2, (300, hidden_dim), jnp.float32)
    outb = jax.block_until_ready(alpha_net_forward(xb, w1, b1, w2, b2))
    refb = _reference(xb, w1, b1, w2, b2)
    assert outb.shape == (300, 1), outb.shape
    assert jnp.allclose(outb, refb, atol=1e-5, rtol=1e-5), "tiled f32 mismatch"

    # 2b) Explicit small tile override (longer grid + partial final block).
    outc = jax.block_until_ready(alpha_net_forward(xb, w1, b1, w2, b2, block_b=64))
    assert outc.shape == (300, 1), outc.shape
    assert jnp.allclose(outc, refb, atol=1e-5, rtol=1e-5), "block_b override mismatch"

    # 3) bf16 production path (halves the dominant HBM stream; f32 accumulation).
    outh = jax.block_until_ready(
        alpha_net_forward(xb, w1, b1, w2, b2, compute_dtype=jnp.bfloat16))
    assert outh.shape == (300, 1), outh.shape
    assert jnp.allclose(outh.astype(jnp.float32), refb, atol=5e-2, rtol=5e-2), \
        "bf16 mismatch vs f32 reference"

    print("KERNEL_OK")
</pallas_src>

<mosaic_0001>
module attributes {stable_mosaic.version = 11 : i64} {
  func.func @alpha_net_kernel(%arg0: i32, %arg1: memref<8x32xf32, #tpu.memory_space<vmem>>, %arg2: memref<32x16xf32, #tpu.memory_space<vmem>>, %arg3: memref<1x16xf32, #tpu.memory_space<vmem>>, %arg4: memref<1x16xf32, #tpu.memory_space<vmem>>, %arg5: memref<1x1xf32, #tpu.memory_space<vmem>>, %arg6: memref<1x1x8xf32, #tpu.memory_space<vmem>>) attributes {dimension_semantics = [#tpu.dimension_semantics<parallel>], iteration_bounds = array<i64: 1>, scalar_prefetch = 0 : i64, scratch_operands = 0 : i64, tpu.core_type = #tpu.core_type<tc>, window_params = [{transform_indices = @transform_0, window_bounds = array<i64: 8, 32>}, {pipeline_mode = #tpu.pipeline_mode<synchronous>, transform_indices = @transform_1, window_bounds = array<i64: 32, 16>}, {pipeline_mode = #tpu.pipeline_mode<synchronous>, transform_indices = @transform_2, window_bounds = array<i64: 1, 16>}, {pipeline_mode = #tpu.pipeline_mode<synchronous>, transform_indices = @transform_3, window_bounds = array<i64: 1, 16>}, {pipeline_mode = #tpu.pipeline_mode<synchronous>, transform_indices = @transform_4, window_bounds = array<i64: 1, 1>}, {transform_indices = @transform_5, window_bounds = array<i64: 1, 1, 8>}]} {
    %c0 = arith.constant 0 : index
    %c0_0 = arith.constant 0 : index
    %0 = vector.load %arg1[%c0, %c0_0] : memref<8x32xf32, #tpu.memory_space<vmem>>, vector<8x32xf32>
    %cst = arith.constant 0.000000e+00 : f32
    %1 = vector.broadcast %cst : f32 to vector<8x32xf32>
    %2 = arith.maximumf %0, %1 : vector<8x32xf32>
    %c0_1 = arith.constant 0 : index
    %c0_2 = arith.constant 0 : index
    %3 = vector.load %arg2[%c0_1, %c0_2] : memref<32x16xf32, #tpu.memory_space<vmem>>, vector<32x16xf32>
    %cst_3 = arith.constant dense<0.000000e+00> : vector<8x16xf32>
    %4 = tpu.matmul %2, %3, %cst_3 {dimension_numbers = #tpu.dot_dimension_numbers<[1], [0], [0], [1], [0, 0, 1, 1], [], []>} : vector<8x32xf32>, vector<32x16xf32>, vector<8x16xf32> -> vector<8x16xf32>
    %c0_4 = arith.constant 0 : index
    %c0_5 = arith.constant 0 : index
    %5 = vector.load %arg3[%c0_4, %c0_5] : memref<1x16xf32, #tpu.memory_space<vmem>>, vector<1x16xf32>
    %6 = vector.broadcast %5 : vector<1x16xf32> to vector<8x16xf32>
    %7 = arith.addf %4, %6 : vector<8x16xf32>
    %cst_6 = arith.constant 0.000000e+00 : f32
    %8 = vector.broadcast %cst_6 : f32 to vector<8x16xf32>
    %9 = arith.maximumf %7, %8 : vector<8x16xf32>
    %c0_7 = arith.constant 0 : index
    %c0_8 = arith.constant 0 : index
    %10 = vector.load %arg4[%c0_7, %c0_8] : memref<1x16xf32, #tpu.memory_space<vmem>>, vector<1x16xf32>
    %11 = vector.broadcast %10 : vector<1x16xf32> to vector<8x16xf32>
    %12 = arith.mulf %9, %11 : vector<8x16xf32>
    %cst_9 = arith.constant dense<0.000000e+00> : vector<8xf32>
    %13 = vector.multi_reduction <add>, %12, %cst_9 [1] : vector<8x16xf32> to vector<8xf32>
    %14 = vector.shape_cast %13 : vector<8xf32> to vector<8x1xf32>
    %c0_10 = arith.constant 0 : index
    %c0_11 = arith.constant 0 : index
    %15 = vector.load %arg5[%c0_10, %c0_11] : memref<1x1xf32, #tpu.memory_space<vmem>>, vector<1x1xf32>
    %16 = vector.broadcast %15 : vector<1x1xf32> to vector<8x1xf32>
    %17 = arith.addf %14, %16 : vector<8x1xf32>
    %18 = tpu.transpose %17, [1, 0] : vector<8x1xf32> -> vector<1x8xf32>
    %19 = vector.shape_cast %18 : vector<1x8xf32> to vector<1x1x8xf32>
    %c0_12 = arith.constant 0 : index
    %c0_13 = arith.constant 0 : index
    %c0_14 = arith.constant 0 : index
    %20 = vector.load %arg6[%c0_12, %c0_13, %c0_14] : memref<1x1x8xf32, #tpu.memory_space<vmem>>, vector<1x1x8xf32>
    tpu.vector_store %arg6[%c0_12, %c0_13, %c0_14], %19 {strides = array<i32>} : memref<1x1x8xf32, #tpu.memory_space<vmem>>, vector<1x1x8xf32>,
    return
  }
  func.func @transform_0(%arg0: i32) -> (i32, i32) {
    %c0_i32 = arith.constant 0 : i32
    %c0_i32_0 = arith.constant 0 : i32
    return %arg0, %c0_i32 : i32, i32
  }
  func.func @transform_1(%arg0: i32) -> (i32, i32) {
    %c0_i32 = arith.constant 0 : i32
    %c0_i32_0 = arith.constant 0 : i32
    %c0_i32_1 = arith.constant 0 : i32
    return %c0_i32, %c0_i32_0 : i32, i32
  }
  func.func @transform_2(%arg0: i32) -> (i32, i32) {
    %c0_i32 = arith.constant 0 : i32
    %c0_i32_0 = arith.constant 0 : i32
    %c0_i32_1 = arith.constant 0 : i32
    return %c0_i32, %c0_i32_0 : i32, i32
  }
  func.func @transform_3(%arg0: i32) -> (i32, i32) {
    %c0_i32 = arith.constant 0 : i32
    %c0_i32_0 = arith.constant 0 : i32
    %c0_i32_1 = arith.constant 0 : i32
    return %c0_i32, %c0_i32_0 : i32, i32
  }
  func.func @transform_4(%arg0: i32) -> (i32, i32) {
    %c0_i32 = arith.constant 0 : i32
    %c0_i32_0 = arith.constant 0 : i32
    %c0_i32_1 = arith.constant 0 : i32
    return %c0_i32, %c0_i32_0 : i32, i32
  }
  func.func @transform_5(%arg0: i32) -> (i32, i32, i32) {
    %c0_i32 = arith.constant 0 : i32
    %c0_i32_0 = arith.constant 0 : i32
    %c0_i32_1 = arith.constant 0 : i32
    return %arg0, %c0_i32, %c0_i32_0 : i32, i32, i32
  }
}

</mosaic_0001>

<llo_original>
// kernel: tpu_custom_call.1
$region0: #{tpu_custom_call.1}
  #allocation0 [shape = 'u32[]', space=smem, size = 0x4, offset = 0x4, fixed_abs, tag = 'smem constant byte address 0x4 - core index']
  #allocation1 [shape = 'u32[144,128]{1,0:T(1,128)}', space=vmem, size = 0x12000, scoped, tag = 'internal scratch']
  #allocation2 [shape = 'f32[1,1]{1,0:T(1,128)S(1)}', space=vmem, size = 0x200, scoped, tag = 'scoped memory for tpu_custom_call.1']
  %s0 = inlined_call_operand.vmem [shape: f32[8,32], index: 0, kind: input, shape index: {}]
  %s1 = inlined_call_operand.vmem [shape: f32[32,16], index: 1, kind: input, shape index: {}]
  %s2 = inlined_call_operand.vmem [shape: f32[1,16], index: 2, kind: input, shape index: {}]
  %s3 = inlined_call_operand.vmem [shape: f32[1,16], index: 3, kind: input, shape index: {}]
  %s4 = inlined_call_operand.<no memory space> [shape: f32[1,1], index: 4, kind: input, shape index: {}]
  %s5 = inlined_call_operand.hbm [shape: f32[1,1,8], index: 5, kind: output, shape index: {}]
  %s6 = sld [smem:[#allocation0]]
  $region30: #{tpu_custom_call.1} parent=0
    _
  %s8 = ssub.s32 1, %s6
  %s9 = scalar_select 0, %s8, %s6
  %v10 = vstv %s4
  %11 = vst [vmem:[#allocation2] sm:$0x1] %v10
  $region1: #{tpu_custom_call.1} parent=0
    #allocation3 [shape = 'u8[512]{0}', space=vmem, size = 0x400, scoped, tag = 'output window, operand 0, single buffered']
    #allocation4 [shape = 's32[1]{0}', space=sflag, size = 0x4, scoped, tag = 'scoped memory for tpu_custom_call.1']
    %12 = vsyncpa [#allocation4], 0
    // Predicated region
    $region2: #{tpu_custom_call.1} parent=1 // pred_check
      _
    $region3: #{tpu_custom_call.1} parent=1 // pred_check_branch
      %14 = sbr.rel (0) target = $region5
    $region4: #{tpu_custom_call.1} parent=1 // pred_region
      _
    $region5: #{tpu_custom_call.1} parent=1 // pred_fallthru
      _
    // Predicated region
    $region6: #{tpu_custom_call.1} parent=1 // pred_check
      _
    $region7: #{tpu_custom_call.1} parent=1 // pred_check_branch
      %16 = sbr.rel (0) target = $region9
    $region8: #{tpu_custom_call.1} parent=1 // pred_region
      _
    $region9: #{tpu_custom_call.1} parent=1 // pred_fallthru
      _
    // Predicated region
    $region10: #{tpu_custom_call.1} parent=1 // pred_check
      _
    $region11: #{tpu_custom_call.1} parent=1 // pred_check_branch
      %18 = sbr.rel (0) target = $region13
    $region12: #{tpu_custom_call.1} parent=1 // pred_region
      _
    $region13: #{tpu_custom_call.1} parent=1 // pred_fallthru
      _
    // Predicated region
    $region14: #{tpu_custom_call.1} parent=1 // pred_check
      _
    $region15: #{tpu_custom_call.1} parent=1 // pred_check_branch
      %20 = sbr.rel (0) target = $region17
    $region16: #{tpu_custom_call.1} parent=1 // pred_region
      _
    $region17: #{tpu_custom_call.1} parent=1 // pred_fallthru
      _
    // Predicated region
    $region18: #{tpu_custom_call.1} parent=1 // pred_check
      _
    $region19: #{tpu_custom_call.1} parent=1 // pred_check_branch
      %22 = sbr.rel (0) target = $region21
    $region20: #{tpu_custom_call.1} parent=1 // pred_region
      _
    $region21: #{tpu_custom_call.1} parent=1 // pred_fallthru
      _
    %v23 = vld [vmem:[%s0] sm:$0xff]
    %v24 = vmax.f32 %v23, 0.0
    %v25 = vld [vmem:[%s1] sm:$0xff]
    %v26 = vld [vmem:[%s1 + $0x8] sm:$0xff]
    %v27 = vld [vmem:[%s1 + $0x10] sm:$0xff]
    %v28 = vld [vmem:[%s1 + $0x18] sm:$0xff]
    %v29 = vld [vmem:[%s2] sm:$0x1]
    %v31 = vlaneseq
    %v32 = vshrl.u32 %v31, 7
    %v33 = vsub.s32 0, %v32
    %v34 = vrot.slane %v29, %v33
    %vm36 = vcmask 261120
    %v38 = vsel %vm36, %v24, 0
    %40 = vmatprep.subr.mxu0 0.0
    %41 = vmatpush1.msra.mxu0 0.0
    %42 = vmatprep.subr.mxu0 0.0
    %43 = vmatpush1.msra.mxu0 0.0
    %44 = vmatprep.subr.mxu0 0.0
    %45 = vmatpush1.msra.mxu0 0.0
    %46 = vmatprep.subr.mxu0 0.0
    %47 = vmatpush1.msra.mxu0 0.0
    %48 = vmatprep.subr.mxu0 0.0
    %49 = vmatpush1.msra.mxu0 0.0
    %50 = vmatprep.subr.mxu0 0.0
    %51 = vmatpush1.msra.mxu0 0.0
    %52 = vmatprep.subr.mxu0 0.0
    %53 = vmatpush1.msra.mxu0 0.0
    %54 = vmatprep.subr.mxu0 0.0
    %55 = vmatpush1.msra.mxu0 0.0
    %56 = vmatprep.subr.mxu0 0.0
    %57 = vmatpush1.msra.mxu0 0.0
    %58 = vmatprep.subr.mxu0 0.0
    %59 = vmatpush1.msra.mxu0 0.0
    %60 = vmatprep.subr.mxu0 0.0
    %61 = vmatpush1.msra.mxu0 0.0
    %62 = vmatprep.subr.mxu0 0.0
    %63 = vmatpush1.msra.mxu0 0.0
    %64 = vmatprep.subr.mxu0 0.0
    %65 = vmatpush1.msra.mxu0 %v28
    %66 = vmatprep.subr.mxu0 0.0
    %67 = vmatpush1.msra.mxu0 %v27
    %68 = vmatprep.subr.mxu0 0.0
    %69 = vmatpush1.msra.mxu0 %v26
    %70 = vmatprep.subr.mxu0 0.0
    %71 = vmatpush1.msra.mxu0 %v25
    %72 = vmatprep.subr.mxu0 0.0
    %73 = vmatpush2.msra.mxu0 0.0
    %74 = vmatprep.subr.mxu0 0.0
    %75 = vmatpush2.msra.mxu0 0.0
    %76 = vmatprep.subr.mxu0 0.0
    %77 = vmatpush2.msra.mxu0 0.0
    %78 = vmatprep.subr.mxu0 0.0
    %79 = vmatpush2.msra.mxu0 0.0
    %80 = vmatprep.subr.mxu0 0.0
    %81 = vmatpush2.msra.mxu0 0.0
    %82 = vmatprep.subr.mxu0 0.0
    %83 = vmatpush2.msra.mxu0 0.0
    %84 = vmatprep.subr.mxu0 0.0
    %85 = vmatpush2.msra.mxu0 0.0
    %86 = vmatprep.subr.mxu0 0.0
    %87 = vmatpush2.msra.mxu0 0.0
    %88 = vmatprep.subr.mxu0 0.0
    %89 = vmatpush2.msra.mxu0 0.0
    %90 = vmatprep.subr.mxu0 0.0
    %91 = vmatpush2.msra.mxu0 0.0
    %92 = vmatprep.subr.mxu0 0.0
    %93 = vmatpush2.msra.mxu0 0.0
    %94 = vmatprep.subr.mxu0 0.0
    %95 = vmatpush2.msra.mxu0 0.0
    %96 = vmatprep.subr.mxu0 0.0
    %97 = vmatpush2.msra.mxu0 0.0
    %98 = vmatprep.subr.mxu0 0.0
    %99 = vmatpush2.msra.mxu0 0.0
    %100 = vmatprep.subr.mxu0 0.0
    %101 = vmatpush2.msra.mxu0 0.0
    %102 = vmatprep.subr.mxu0 0.0
    %103 = vmatpush2.msra.mxu0 0.0
    %104 = vmatprep.mubr.f32.mxu0 0.0
    %105 = vmatmul.mubr.f32.gmra.mxu0 %v38
    %v106 = vpop.f32.mrf.mxu0
    %v107 = vadd.f32 %v34, %v106
    %v108 = vpop.f32.mrf.mxu0
    %109 = vdwg.mxu0
    %v110 = vmax.f32 %v107, 0.0
    %v111 = vld [vmem:[%s3] sm:$0x1]
    %v113 = vlaneseq
    %v114 = vshrl.u32 %v113, 7
    %v115 = vsub.s32 0, %v114
    %v116 = vrot.slane %v111, %v115
    %v118 = vmul.f32 %v110, %v116
    %vm119 = vcmask 130048
    %v120 = vsel %vm119, %v118, 0.0
    %121 = vadd.xlane.f32.xlu0 %v120
    %v122 = vpop.xlane.xlu0 %121
    %v123 = vld [vmem:[#allocation2] sm:$0x1]
    %v125 = vlaneseq
    %v126 = vshrl.u32 %v125, 7
    %v127 = vsub.s32 0, %v126
    %v128 = vrot.slane %v123, %v127
    %v130 = vadd.f32 %v122, %v128
    %131 = vxpose.xlu0.b32.start [1/16] %v130, 128
    %132 = vxpose.xlu0.b32.cont [2/16] 0.0, 128
    %133 = vxpose.xlu0.b32.cont [3/16] 0.0, 128
    %134 = vxpose.xlu0.b32.cont [4/16] 0.0, 128
    %135 = vxpose.xlu0.b32.cont [5/16] 0.0, 128
    %136 = vxpose.xlu0.b32.cont [6/16] 0.0, 128
    %137 = vxpose.xlu0.b32.cont [7/16] 0.0, 128
    %138 = vxpose.xlu0.b32.cont [8/16] 0.0, 128
    %139 = vxpose.xlu0.b32.cont [9/16] 0.0, 128
    %140 = vxpose.xlu0.b32.cont [10/16] 0.0, 128
    %141 = vxpose.xlu0.b32.cont [11/16] 0.0, 128
    %142 = vxpose.xlu0.b32.cont [12/16] 0.0, 128
    %143 = vxpose.xlu0.b32.cont [13/16] 0.0, 128
    %144 = vxpose.xlu0.b32.cont [14/16] 0.0, 128
    %145 = vxpose.xlu0.b32.cont [15/16] 0.0, 128
    %146 = vxpose.xlu0.b32.end [16/16] 0.0, 128
    %v147 = vpop.trf.xlu0
    %v148 = vpop.trf.xlu0
    %v149 = vpop.trf.xlu0
    %v150 = vpop.trf.xlu0
    %v151 = vpop.trf.xlu0
    %v152 = vpop.trf.xlu0
    %v153 = vpop.trf.xlu0
    %v154 = vpop.trf.xlu0
    %v155 = vpop.trf.xlu0
    %v156 = vpop.trf.xlu0
    %v157 = vpop.trf.xlu0
    %v158 = vpop.trf.xlu0
    %v159 = vpop.trf.xlu0
    %v160 = vpop.trf.xlu0
    %v161 = vpop.trf.xlu0
    %v162 = vpop.trf.xlu0
    %vm163 = vcmask 57344
    %164 = vst.msk [vmem:[#allocation3] sm:$0x1] %vm163, %v147
    // Predicated region
    $region22: #{tpu_custom_call.1} parent=1 // pred_check
      _
    $region23: #{tpu_custom_call.1} parent=1 // pred_check_branch
      %166 = sbr.rel (0) target = $region25
    $region24: #{tpu_custom_call.1} parent=1 // pred_region
      %s168 = ssub.s32 16, 16
      %169 = vsyncadd [#allocation4], %s168
      %s171 = sshll.u32 [#allocation3], 4
      %s172 = int_to_ptr.vmem [resolvable:$true] %s171
      %174 = dma.vmem_to_hbm [thread:$0]  %s172, 16, %s5, [#allocation4]
    $region25: #{tpu_custom_call.1} parent=1 // pred_fallthru
      _
    // Predicated region
    $region26: #{tpu_custom_call.1} parent=1 // pred_check
      _
    $region27: #{tpu_custom_call.1} parent=1 // pred_check_branch
      %176 = sbr.rel (0) target = $region29
    $region28: #{tpu_custom_call.1} parent=1 // pred_region
      %177 = dma.done [#allocation4], 16
    $region29: #{tpu_custom_call.1} parent=1 // pred_fallthru
      _
    %178 = vsyncpa [#allocation4], 1

</llo_original>
